<compile_context>
chip_gen: v7x
topology: tpu7x:2x2x1
jax: 0.10.0
libtpu: 0.0.40
codegen_flags: <defaults>
</compile_context>

<pallas_src>
import jax
import jax.numpy as jnp
from jax.experimental import pallas as pl
from jax.experimental.pallas import tpu as pltpu


def _round_up(a: int, b: int) -> int:
    return ((a + b - 1) // b) * b


def _pick_tile(size: int, max_tile: int, align: int) -> int:
    """Largest power-of-two-ish tile (multiple of `align`, <= max_tile) whose
    padding waste stays within ~12.5% of the minimally aligned size."""
    size_al = _round_up(max(size, 1), align)
    limit = max(size_al, (size_al * 9) // 8)
    best = align
    t = align * 2
    while t <= max_tile:
        if _round_up(size, t) <= limit:
            best = t
        t *= 2
    return best


def _rbf_kernel(x_ref, x2_ref, ct2_ref, cg_ref, o_ref):
    # x_ref:   (tm, Dp)  row tile of inputs (native / promoted dtype)
    # x2_ref:  (tm, 1)   precomputed ||x||^2 (f32), hoisted out of the grid
    # ct2_ref: (Dp, tn)  2 * centres^T column tile (native / promoted dtype)
    # cg_ref:  (2,  tn)  row 0: ||c||^2 ; row 1: -exp(-2*log_sigma)   (f32)
    # o_ref:   (tm, tn)  lane-dense output tile
    xc2 = jnp.dot(x_ref[...], ct2_ref[...],
                  preferred_element_type=jnp.float32)          # (tm, tn) MXU
    cg = cg_ref[...]                                           # (2, tn) f32
    c2 = cg[0:1, :]
    neg_gamma = cg[1:2, :]
    # ||x-c||^2 via the expansion, clamped at 0 against cancellation error.
    sq = jnp.maximum(x2_ref[...] + c2 - xc2, 0.0)
    # Gaussian: exp(-(||x-c||/sigma)^2) == exp(||x-c||^2 * (-exp(-2*log_sigma)))
    o_ref[...] = jnp.exp(sq * neg_gamma).astype(o_ref.dtype)


def rbf_forward(x, centres, log_sigmas, *, max_tm=512, max_tn=512,
                out_dtype=None, allow_fallback=True, vmem_limit_bytes=None):
    """x: (N, D); centres: (M, D); log_sigmas: (M,) -> (N, M)."""
    N, D = x.shape
    M, D2 = centres.shape
    assert D == D2
    if out_dtype is None:
        out_dtype = x.dtype

    # --- tiny-problem fallback: a single-step pallas_call is pure overhead ---
    if allow_fallback and N * M <= 4 * 8 * 128:
        xf = x.astype(jnp.float32)
        cf = centres.astype(jnp.float32)
        diff = xf[:, None, :] - cf[None, :, :]
        sq = jnp.sum(diff * diff, axis=-1)
        gamma = jnp.exp(-2.0 * log_sigmas.astype(jnp.float32))[None, :]
        return jnp.exp(-sq * gamma).astype(out_dtype)

    # --- tile selection: big, lane-dense, but bounded padding waste ---
    tm = _pick_tile(N, max_tm, 8)
    tn = _pick_tile(M, max_tn, 128)

    op_dtype = jnp.promote_types(x.dtype, centres.dtype)
    in_b = jnp.dtype(op_dtype).itemsize
    out_b = jnp.dtype(out_dtype).itemsize
    d_pad = _round_up(D, 128)       # lane-dense K dim for the MXU feed

    def _footprint(tm_, tn_):       # double-buffered per-step working set
        return 2 * (tm_ * d_pad * in_b + d_pad * tn_ * in_b
                    + tm_ * 4 + 2 * tn_ * 4 + tm_ * tn_ * out_b)

    # VMEM guard (v7x has only 64 MiB physical): shrink tiles until we fit.
    budget = 36 * 1024 * 1024
    while _footprint(tm, tn) > budget and (tm > 8 or tn > 128):
        if tm > 8:
            tm //= 2
        else:
            tn //= 2

    n_pad = _round_up(N, tm)
    m_pad = _round_up(M, tn)

    # v7x has 2 TensorCores: avoid a single-step grid when it can be split.
    if n_pad == tm and m_pad == tn:
        if tn >= 256:
            tn //= 2
        elif tm >= 16:
            tm //= 2
        n_pad = _round_up(N, tm)
        m_pad = _round_up(M, tn)

    if vmem_limit_bytes is None:
        vmem_limit_bytes = int(min(max(_footprint(tm, tn) + (8 << 20), 32 << 20),
                                   56 << 20))

    # --- one-time wrapper-side precompute (hoisted out of the grid loop) ---
    xf = x.astype(jnp.float32)
    cf = centres.astype(jnp.float32)

    xp = x.astype(op_dtype)                                      # streamed dtype
    x2 = jnp.sum(xf * xf, axis=-1, keepdims=True)                # (N, 1)  f32
    ct2 = (2.0 * cf).astype(op_dtype).T                          # (D, M)  exact *2
    c2 = jnp.sum(cf * cf, axis=-1)                               # (M,)    f32
    neg_gamma = -jnp.exp(-2.0 * log_sigmas.astype(jnp.float32))  # (M,)    f32
    cg = jnp.stack([c2, neg_gamma], axis=0)                      # (2, M)  f32

    xp = jnp.pad(xp, ((0, n_pad - N), (0, d_pad - D)))
    x2 = jnp.pad(x2, ((0, n_pad - N), (0, 0)))
    ct2 = jnp.pad(ct2, ((0, d_pad - D), (0, m_pad - M)))
    cg = jnp.pad(cg, ((0, 0), (0, m_pad - M)))   # neg_gamma=0 pad -> exp(0)=1

    grid = (n_pad // tm, m_pad // tn)

    out = pl.pallas_call(
        _rbf_kernel,
        out_shape=jax.ShapeDtypeStruct((n_pad, m_pad), out_dtype),
        grid_spec=pltpu.PrefetchScalarGridSpec(
            num_scalar_prefetch=0,
            grid=grid,
            in_specs=[
                pl.BlockSpec((tm, d_pad), lambda i, j: (i, 0)),   # x row tile
                pl.BlockSpec((tm, 1), lambda i, j: (i, 0)),       # ||x||^2
                pl.BlockSpec((d_pad, tn), lambda i, j: (0, j)),   # 2*centres^T
                pl.BlockSpec((2, tn), lambda i, j: (0, j)),       # [||c||^2; -gamma]
            ],
            out_specs=pl.BlockSpec((tm, tn), lambda i, j: (i, j)),
        ),
        compiler_params=pltpu.CompilerParams(
            dimension_semantics=("parallel", "parallel"),
            vmem_limit_bytes=int(vmem_limit_bytes),
        ),
    )(xp, x2, ct2, cg)

    return out[:N, :M]


def rbf_reference(x, centres, log_sigmas):
    # pure-JAX reference matching the PyTorch forward exactly
    diff = x[:, None, :] - centres[None, :, :]
    dist = jnp.sqrt(jnp.sum(diff * diff, axis=-1)) / jnp.exp(log_sigmas)[None, :]
    return jnp.exp(-(dist ** 2))


if __name__ == "__main__":
    key = jax.random.PRNGKey(0)
    k1, k2, k3, k4 = jax.random.split(key, 4)

    # --- Case 1: spec-sized tiny problem (N=8, D=32, M=16) -> fallback path ---
    N, D, M = 8, 32, 16
    x = jax.random.normal(k1, (N, D), dtype=jnp.float32)
    centres = jax.random.normal(k2, (M, D), dtype=jnp.float32)
    log_sigmas = jnp.zeros((M,), dtype=jnp.float32)

    out = jax.block_until_ready(rbf_forward(x, centres, log_sigmas))
    ref = rbf_reference(x, centres, log_sigmas)
    assert out.shape == (N, M)
    assert jnp.allclose(out, ref, atol=1e-5, rtol=1e-5)

    # --- Case 2: same tiny problem, forced through the Pallas kernel ---
    out2 = jax.block_until_ready(
        rbf_forward(x, centres, log_sigmas, allow_fallback=False))
    assert out2.shape == (N, M)
    assert jnp.allclose(out2, ref, atol=1e-4, rtol=1e-4)

    # --- Case 3: ragged shapes exercising adaptive tiling + padding (f32) ---
    N3, D3, M3 = 200, 40, 272
    x3 = jax.random.normal(k3, (N3, D3), dtype=jnp.float32)
    c3 = jax.random.normal(k4, (M3, D3), dtype=jnp.float32)
    ls3 = 0.1 * jax.random.normal(k1, (M3,), dtype=jnp.float32)

    out3 = jax.block_until_ready(rbf_forward(x3, c3, ls3))
    ref3 = rbf_reference(x3, c3, ls3)
    assert out3.shape == (N3, M3)
    assert jnp.allclose(out3, ref3, atol=1e-4, rtol=1e-4)

    # --- Case 4: bf16 streaming path (operands stay bf16, f32 accumulation) ---
    x4 = x3.astype(jnp.bfloat16)
    c4 = c3.astype(jnp.bfloat16)
    out4 = jax.block_until_ready(
        rbf_forward(x4, c4, ls3, out_dtype=jnp.float32, allow_fallback=False))
    ref4 = rbf_reference(x4.astype(jnp.float32), c4.astype(jnp.float32), ls3)
    assert out4.shape == (N3, M3)
    assert jnp.allclose(out4, ref4, atol=1e-2, rtol=1e-2)

    print("KERNEL_OK")
</pallas_src>

<mosaic_0001>
module attributes {stable_mosaic.version = 11 : i64} {
  func.func @_rbf_kernel(%arg0: i32, %arg1: i32, %arg2: memref<8x128xf32, #tpu.memory_space<vmem>>, %arg3: memref<8x1xf32, #tpu.memory_space<vmem>>, %arg4: memref<128x128xf32, #tpu.memory_space<vmem>>, %arg5: memref<2x128xf32, #tpu.memory_space<vmem>>, %arg6: memref<8x128xf32, #tpu.memory_space<vmem>>) attributes {dimension_semantics = [#tpu.dimension_semantics<parallel>, #tpu.dimension_semantics<parallel>], iteration_bounds = array<i64: 1, 1>, scalar_prefetch = 0 : i64, scratch_operands = 0 : i64, tpu.core_type = #tpu.core_type<tc>, window_params = [{transform_indices = @transform_0, window_bounds = array<i64: 8, 128>}, {transform_indices = @transform_1, window_bounds = array<i64: 8, 1>}, {transform_indices = @transform_2, window_bounds = array<i64: 128, 128>}, {transform_indices = @transform_3, window_bounds = array<i64: 2, 128>}, {transform_indices = @transform_4, window_bounds = array<i64: 8, 128>}]} {
    %c0 = arith.constant 0 : index
    %c0_0 = arith.constant 0 : index
    %0 = vector.load %arg2[%c0, %c0_0] : memref<8x128xf32, #tpu.memory_space<vmem>>, vector<8x128xf32>
    %c0_1 = arith.constant 0 : index
    %c0_2 = arith.constant 0 : index
    %1 = vector.load %arg4[%c0_1, %c0_2] : memref<128x128xf32, #tpu.memory_space<vmem>>, vector<128x128xf32>
    %cst = arith.constant dense<0.000000e+00> : vector<8x128xf32>
    %2 = tpu.matmul %0, %1, %cst {dimension_numbers = #tpu.dot_dimension_numbers<[1], [0], [0], [1], [0, 0, 1, 1], [], []>} : vector<8x128xf32>, vector<128x128xf32>, vector<8x128xf32> -> vector<8x128xf32>
    %c0_3 = arith.constant 0 : index
    %c0_4 = arith.constant 0 : index
    %3 = vector.load %arg5[%c0_3, %c0_4] : memref<2x128xf32, #tpu.memory_space<vmem>>, vector<2x128xf32>
    %4 = vector.extract_strided_slice %3 {offsets = [0, 0], sizes = [1, 128], strides = [1, 1]} : vector<2x128xf32> to vector<1x128xf32>
    %5 = vector.extract_strided_slice %3 {offsets = [1, 0], sizes = [1, 128], strides = [1, 1]} : vector<2x128xf32> to vector<1x128xf32>
    %c0_5 = arith.constant 0 : index
    %c0_6 = arith.constant 0 : index
    %6 = vector.load %arg3[%c0_5, %c0_6] : memref<8x1xf32, #tpu.memory_space<vmem>>, vector<8x1xf32>
    %7 = vector.broadcast %6 : vector<8x1xf32> to vector<8x128xf32>
    %8 = vector.broadcast %4 : vector<1x128xf32> to vector<8x128xf32>
    %9 = arith.addf %7, %8 : vector<8x128xf32>
    %10 = arith.subf %9, %2 : vector<8x128xf32>
    %cst_7 = arith.constant 0.000000e+00 : f32
    %11 = vector.broadcast %cst_7 : f32 to vector<8x128xf32>
    %12 = arith.maximumf %10, %11 : vector<8x128xf32>
    %13 = vector.broadcast %5 : vector<1x128xf32> to vector<8x128xf32>
    %14 = arith.mulf %12, %13 : vector<8x128xf32>
    %15 = math.exp %14 : vector<8x128xf32>
    %c0_8 = arith.constant 0 : index
    %c0_9 = arith.constant 0 : index
    %16 = vector.load %arg6[%c0_8, %c0_9] : memref<8x128xf32, #tpu.memory_space<vmem>>, vector<8x128xf32>
    tpu.vector_store %arg6[%c0_8, %c0_9], %15 {strides = array<i32>} : memref<8x128xf32, #tpu.memory_space<vmem>>, vector<8x128xf32>,
    return
  }
  func.func @transform_0(%arg0: i32, %arg1: i32) -> (i32, i32) {
    %c0_i32 = arith.constant 0 : i32
    %c0_i32_0 = arith.constant 0 : i32
    return %arg0, %c0_i32 : i32, i32
  }
  func.func @transform_1(%arg0: i32, %arg1: i32) -> (i32, i32) {
    %c0_i32 = arith.constant 0 : i32
    %c0_i32_0 = arith.constant 0 : i32
    return %arg0, %c0_i32 : i32, i32
  }
  func.func @transform_2(%arg0: i32, %arg1: i32) -> (i32, i32) {
    %c0_i32 = arith.constant 0 : i32
    %c0_i32_0 = arith.constant 0 : i32
    return %c0_i32, %arg1 : i32, i32
  }
  func.func @transform_3(%arg0: i32, %arg1: i32) -> (i32, i32) {
    %c0_i32 = arith.constant 0 : i32
    %c0_i32_0 = arith.constant 0 : i32
    return %c0_i32, %arg1 : i32, i32
  }
  func.func @transform_4(%arg0: i32, %arg1: i32) -> (i32, i32) {
    %c0_i32 = arith.constant 0 : i32
    return %arg0, %arg1 : i32, i32
  }
}

</mosaic_0001>

<llo_original>
// kernel: tpu_custom_call.1
$region0: #{tpu_custom_call.1}
  #allocation0 [shape = 'u32[]', space=smem, size = 0x4, offset = 0x4, fixed_abs, tag = 'smem constant byte address 0x4 - core index']
  #allocation1 [shape = 'u32[144,128]{1,0:T(1,128)}', space=vmem, size = 0x12000, scoped, tag = 'internal scratch']
  %s0 = inlined_call_operand.vmem [shape: f32[8,128], index: 0, kind: input, shape index: {}]
  %s1 = inlined_call_operand.vmem [shape: f32[8,1], index: 1, kind: input, shape index: {}]
  %s2 = inlined_call_operand.hbm [shape: f32[128,128], index: 2, kind: input, shape index: {}]
  %s3 = inlined_call_operand.vmem [shape: f32[2,128], index: 3, kind: input, shape index: {}]
  %s4 = inlined_call_operand.hbm [shape: f32[8,128], index: 4, kind: output, shape index: {}]
  %s5 = sld [smem:[#allocation0]]
  $region30: #{tpu_custom_call.1} parent=0
    _
  %s7 = ssub.s32 1, %s5
  %s8 = scalar_select 0, %s7, %s5
  $region1: #{tpu_custom_call.1} parent=0
    #allocation2 [shape = 'u8[65536]{0}', space=vmem, size = 0x10000, scoped, tag = 'input window, operand 2, single buffered']
    #allocation3 [shape = 's32[1]{0}', space=sflag, size = 0x4, scoped, tag = 'scoped memory for tpu_custom_call.1']
    #allocation4 [shape = 's32[1]{0}', space=sflag, size = 0x4, scoped, tag = 'scoped memory for tpu_custom_call.1']
    #allocation5 [shape = 'u8[4096]{0}', space=vmem, size = 0x1000, scoped, tag = 'output window, operand 0, single buffered']
    %9 = vsyncpa [#allocation3], 0
    %10 = vsyncpa [#allocation4], 0
    // Predicated region
    $region2: #{tpu_custom_call.1} parent=1 // pred_check
      _
    $region3: #{tpu_custom_call.1} parent=1 // pred_check_branch
      %12 = sbr.rel (0) target = $region5
    $region4: #{tpu_custom_call.1} parent=1 // pred_region
      _
    $region5: #{tpu_custom_call.1} parent=1 // pred_fallthru
      _
    // Predicated region
    $region6: #{tpu_custom_call.1} parent=1 // pred_check
      _
    $region7: #{tpu_custom_call.1} parent=1 // pred_check_branch
      %14 = sbr.rel (0) target = $region9
    $region8: #{tpu_custom_call.1} parent=1 // pred_region
      _
    $region9: #{tpu_custom_call.1} parent=1 // pred_fallthru
      _
    // Predicated region
    $region10: #{tpu_custom_call.1} parent=1 // pred_check
      _
    $region11: #{tpu_custom_call.1} parent=1 // pred_check_branch
      %16 = sbr.rel (0) target = $region13
    $region12: #{tpu_custom_call.1} parent=1 // pred_region
      %s18 = ssub.s32 2048, 2048
      %19 = vsyncadd [#allocation3], %s18
      %s20 = sshll.u32 [#allocation2], 4
      %s21 = int_to_ptr.vmem [resolvable:$true] %s20
      %26 = dma.hbm_to_vmem [thread:$0]  %s2, 2048, %s21, [#allocation3], 128, 128, 8
    $region13: #{tpu_custom_call.1} parent=1 // pred_fallthru
      _
    // Predicated region
    $region14: #{tpu_custom_call.1} parent=1 // pred_check
      _
    $region15: #{tpu_custom_call.1} parent=1 // pred_check_branch
      %28 = sbr.rel (0) target = $region17
    $region16: #{tpu_custom_call.1} parent=1 // pred_region
      _
    $region17: #{tpu_custom_call.1} parent=1 // pred_fallthru
      _
    // Predicated region
    $region18: #{tpu_custom_call.1} parent=1 // pred_check
      _
    $region19: #{tpu_custom_call.1} parent=1 // pred_check_branch
      %30 = sbr.rel (0) target = $region21
    $region20: #{tpu_custom_call.1} parent=1 // pred_region
      %31 = dma.done [#allocation3], 2048
    $region21: #{tpu_custom_call.1} parent=1 // pred_fallthru
      _
    %v32 = vld [vmem:[%s0] sm:$0xff]
    %v33 = vld [vmem:[#allocation2] sm:$0xff]
    %v34 = vld [vmem:[#allocation2 + $0x8] sm:$0xff]
    %v35 = vld [vmem:[#allocation2 + $0x10] sm:$0xff]
    %v36 = vld [vmem:[#allocation2 + $0x18] sm:$0xff]
    %v37 = vld [vmem:[#allocation2 + $0x20] sm:$0xff]
    %v38 = vld [vmem:[#allocation2 + $0x28] sm:$0xff]
    %v39 = vld [vmem:[#allocation2 + $0x30] sm:$0xff]
    %v40 = vld [vmem:[#allocation2 + $0x38] sm:$0xff]
    %v41 = vld [vmem:[#allocation2 + $0x40] sm:$0xff]
    %v42 = vld [vmem:[#allocation2 + $0x48] sm:$0xff]
    %v43 = vld [vmem:[#allocation2 + $0x50] sm:$0xff]
    %v44 = vld [vmem:[#allocation2 + $0x58] sm:$0xff]
    %v45 = vld [vmem:[#allocation2 + $0x60] sm:$0xff]
    %v46 = vld [vmem:[#allocation2 + $0x68] sm:$0xff]
    %v47 = vld [vmem:[#allocation2 + $0x70] sm:$0xff]
    %v48 = vld [vmem:[#allocation2 + $0x78] sm:$0xff]
    %49 = vmatprep.subr.mxu0 0.0
    %50 = vmatpush1.msra.mxu0 %v33
    %51 = vmatprep.subr.mxu0 0.0
    %52 = vmatpush1.msra.mxu0 %v34
    %53 = vmatprep.subr.mxu0 0.0
    %54 = vmatpush1.msra.mxu0 %v35
    %55 = vmatprep.subr.mxu0 0.0
    %56 = vmatpush1.msra.mxu0 %v36
    %57 = vmatprep.subr.mxu0 0.0
    %58 = vmatpush1.msra.mxu0 %v37
    %59 = vmatprep.subr.mxu0 0.0
    %60 = vmatpush1.msra.mxu0 %v38
    %61 = vmatprep.subr.mxu0 0.0
    %62 = vmatpush1.msra.mxu0 %v39
    %63 = vmatprep.subr.mxu0 0.0
    %64 = vmatpush1.msra.mxu0 %v40
    %65 = vmatprep.subr.mxu0 0.0
    %66 = vmatpush1.msra.mxu0 %v41
    %67 = vmatprep.subr.mxu0 0.0
    %68 = vmatpush1.msra.mxu0 %v42
    %69 = vmatprep.subr.mxu0 0.0
    %70 = vmatpush1.msra.mxu0 %v43
    %71 = vmatprep.subr.mxu0 0.0
    %72 = vmatpush1.msra.mxu0 %v44
    %73 = vmatprep.subr.mxu0 0.0
    %74 = vmatpush1.msra.mxu0 %v45
    %75 = vmatprep.subr.mxu0 0.0
    %76 = vmatpush1.msra.mxu0 %v46
    %77 = vmatprep.subr.mxu0 0.0
    %78 = vmatpush1.msra.mxu0 %v47
    %79 = vmatprep.subr.mxu0 0.0
    %80 = vmatpush1.msra.mxu0 %v48
    %81 = vmatprep.subr.mxu0 0.0
    %82 = vmatpush1.msra.mxu0 0.0
    %83 = vmatprep.subr.mxu0 0.0
    %84 = vmatpush1.msra.mxu0 0.0
    %85 = vmatprep.subr.mxu0 0.0
    %86 = vmatpush1.msra.mxu0 0.0
    %87 = vmatprep.subr.mxu0 0.0
    %88 = vmatpush1.msra.mxu0 0.0
    %89 = vmatprep.subr.mxu0 0.0
    %90 = vmatpush1.msra.mxu0 0.0
    %91 = vmatprep.subr.mxu0 0.0
    %92 = vmatpush1.msra.mxu0 0.0
    %93 = vmatprep.subr.mxu0 0.0
    %94 = vmatpush1.msra.mxu0 0.0
    %95 = vmatprep.subr.mxu0 0.0
    %96 = vmatpush1.msra.mxu0 0.0
    %97 = vmatprep.subr.mxu0 0.0
    %98 = vmatpush1.msra.mxu0 0.0
    %99 = vmatprep.subr.mxu0 0.0
    %100 = vmatpush1.msra.mxu0 0.0
    %101 = vmatprep.subr.mxu0 0.0
    %102 = vmatpush1.msra.mxu0 0.0
    %103 = vmatprep.subr.mxu0 0.0
    %104 = vmatpush1.msra.mxu0 0.0
    %105 = vmatprep.subr.mxu0 0.0
    %106 = vmatpush1.msra.mxu0 0.0
    %107 = vmatprep.subr.mxu0 0.0
    %108 = vmatpush1.msra.mxu0 0.0
    %109 = vmatprep.subr.mxu0 0.0
    %110 = vmatpush1.msra.mxu0 0.0
    %111 = vmatprep.subr.mxu0 0.0
    %112 = vmatpush1.msra.mxu0 0.0
    %113 = vmatprep.mubr.f32.mxu0 0.0
    %114 = vmatmul.mubr.f32.gmra.mrb[0].mxu0 %v32
    %v115 = vpop.f32.mrb[0].mxu0
    %v116 = vadd.f32 0.0, %v115
    %v117 = vpop.f32.mrb[0].mxu0
    %118 = vdwg.mxu0
    %v119 = vld [vmem:[%s3] sm:$0x3]
    %v120 = vld [vmem:[%s1] sm:$0xff]
    %122 = vset.pattern.permute.xlu0 0
    %123 = vperm.xlu0 %122, %v120
    %v124 = vpop.permute.xlu0 %123
    %v126 = vlaneseq
    %v127 = vshrl.u32 %v126, 7
    %v128 = vsub.s32 0, %v127
    %v129 = vrot.slane %v119, %v128
    %v130 = vadd.f32 %v124, %v129
    %v131 = vsub.f32 %v130, %v116
    %v132 = vmax.f32 %v131, 0.0
    %v133 = vlaneseq
    %v134 = vshrl.u32 %v133, 7
    %v135 = vsub.s32 1, %v134
    %v136 = vrot.slane %v119, %v135
    %v137 = vmul.f32 %v132, %v136
    %v138 = vmul.f32 %v137, 1.442695
    %v139 = vpow.pop %v138
    %140 = vst [vmem:[#allocation5] sm:$0xff] %v139
    // Predicated region
    $region22: #{tpu_custom_call.1} parent=1 // pred_check
      _
    $region23: #{tpu_custom_call.1} parent=1 // pred_check_branch
      %142 = sbr.rel (0) target = $region25
    $region24: #{tpu_custom_call.1} parent=1 // pred_region
      %s144 = ssub.s32 128, 128
      %145 = vsyncadd [#allocation4], %s144
      %s147 = sshll.u32 [#allocation5], 4
      %s148 = int_to_ptr.vmem [resolvable:$true] %s147
      %150 = dma.vmem_to_hbm [thread:$0]  %s148, 128, %s4, [#allocation4]
    $region25: #{tpu_custom_call.1} parent=1 // pred_fallthru
      _
    // Predicated region
    $region26: #{tpu_custom_call.1} parent=1 // pred_check
      _
    $region27: #{tpu_custom_call.1} parent=1 // pred_check_branch
      %152 = sbr.rel (0) target = $region29
    $region28: #{tpu_custom_call.1} parent=1 // pred_region
      %153 = dma.done [#allocation4], 128
    $region29: #{tpu_custom_call.1} parent=1 // pred_fallthru
      _
    %154 = vsyncpa [#allocation3], 1
    %155 = vsyncpa [#allocation4], 1

</llo_original>
